<compile_context>
chip_gen: v6e
topology: v6e:2x2x1
jax: 0.10.0
libtpu: 0.0.40
codegen_flags: <defaults>
</compile_context>

<pallas_src>
import functools

import jax
import jax.numpy as jnp
import numpy as np
from jax.experimental import pallas as pl
from jax.experimental.pallas import tpu as pltpu


def _round_up(x, m):
    return (x + m - 1) // m * m


def _deconv_prelu_kernel(p_ref, w_ref, b_ref, a_ref, o_ref):
    # p_ref: [tm, Kcp] bf16, w_ref: [Kcp, CoutF] bf16, b_ref: [1, CoutF] f32,
    # a_ref: [1] f32 in SMEM, o_ref: [tm, CoutF] bf16.
    acc = jnp.dot(p_ref[...], w_ref[...], preferred_element_type=jnp.float32)
    acc = acc + b_ref[...]                     # bias broadcast over rows
    alpha = a_ref[0]                           # SMEM scalar (PReLU slope)
    o_ref[...] = jnp.where(acc >= 0.0, acc, alpha * acc).astype(o_ref.dtype)


def _vmem_budget_bytes():
    # 64 MiB per TC on v7x, 128 MiB on v5e/v6e; keep ~30% headroom.
    try:
        cap = pltpu.get_tpu_info().vmem_capacity_bytes
    except Exception:
        cap = 64 * 1024 * 1024
    return min(int(cap * 0.7), 96 * 1024 * 1024)


@functools.partial(jax.jit, static_argnames=("stride", "padding", "tm_max"))
def deconv_block(x, weight, bias, alpha, *, stride, padding, tm_max=2048):
    """ConvTranspose2d(stride, padding) + PReLU.  x: [N, Cin, H, W] float32 (NCHW)."""
    N, Cin, H, W = x.shape
    Cin_w, Cout, K, K2 = weight.shape
    assert Cin == Cin_w and K == K2
    s, p = stride, padding
    OH = (H - 1) * s - 2 * p + K
    OW = (W - 1) * s - 2 * p + K
    nphase = s * s

    # ---- shared-tap superset im2col (plain JAX glue, bf16) -------------------
    Ks = -(-K // s)                          # kernel taps per spatial dim per phase
    Dmin, Dmax = p // s, (s - 1 + p) // s    # per-phase input-offset range
    d_lo = Dmin - (Ks - 1)                   # most negative input offset used
    T1 = Ks + Dmax - Dmin                    # superset taps/dim shared by all phases
    QH, QW = -(-OH // s), -(-OW // s)        # uniform per-phase output grid (padded)
    pad_lo = max(0, -d_lo)
    pad_hi_h = max(0, QH + Dmax - H)
    pad_hi_w = max(0, QW + Dmax - W)

    x_nhwc = jnp.pad(x.astype(jnp.bfloat16).transpose(0, 2, 3, 1),
                     ((0, 0), (pad_lo, pad_hi_h), (pad_lo, pad_hi_w), (0, 0)))

    taps = []
    for dh in range(T1):
        hs = pad_lo + d_lo + dh
        for dw in range(T1):
            ws = pad_lo + d_lo + dw
            taps.append(x_nhwc[:, hs:hs + QH, ws:ws + QW, :])   # [N, QH, QW, Cin]
    M = N * QH * QW
    Kc = Cin * T1 * T1
    # ci-major, tap-minor contraction ordering (matches w_fold reshape below)
    patches = jnp.stack(taps, axis=-1).reshape(M, Kc)

    # ---- fold the s*s phases into the weight's output-channel axis -----------
    CoutF = nphase * Cout
    w_fold = jnp.zeros((Cin, T1, T1, nphase, Cout), weight.dtype)
    for rh in range(s):
        kh0, Dh = (rh + p) % s, (rh + p) // s
        for rw in range(s):
            kw0, Dw = (rw + p) % s, (rw + p) // s
            ph = rh * s + rw
            for jh in range(Ks):
                kh = kh0 + s * jh
                if kh >= K:
                    continue
                dh = (Dh - jh) - d_lo
                for jw in range(Ks):
                    kw = kw0 + s * jw
                    if kw >= K:
                        continue
                    dw = (Dw - jw) - d_lo
                    w_fold = w_fold.at[:, dh, dw, ph, :].set(weight[:, :, kh, kw])
    w_fold = w_fold.reshape(Kc, CoutF).astype(jnp.bfloat16)
    bias_fold = jnp.tile(bias.astype(jnp.float32), nphase).reshape(1, CoutF)
    alpha_s = jnp.asarray(alpha, jnp.float32).reshape(1)

    # ---- tiling / padding -----------------------------------------------------
    Kcp = _round_up(Kc, 16)                 # bf16 sublane multiple; NOT 128 (contraction)
    out_dtype = jnp.bfloat16                # bf16 stores; f32 math inside the kernel
    vmem_budget = _vmem_budget_bytes()

    tm = min(tm_max, _round_up(M, 16))

    def _working_set(t):                    # 2x-buffered patch+out tiles + resident w/bias
        return 2 * t * Kcp * 2 + 2 * t * CoutF * 2 + Kcp * CoutF * 2 + CoutF * 4

    while tm > 128 and _working_set(tm) > vmem_budget // 2:
        tm //= 2
    tm = max(16, tm)
    Mp = _round_up(M, tm)

    patches = jnp.pad(patches, ((0, Mp - M), (0, Kcp - Kc)))
    w_fold = jnp.pad(w_fold, ((0, Kcp - Kc), (0, 0)))

    cost = pl.CostEstimate(
        flops=2 * Mp * Kcp * CoutF,
        transcendentals=0,
        bytes_accessed=Mp * Kcp * 2 + Kcp * CoutF * 2 + CoutF * 4 + Mp * CoutF * 2,
    )

    out_all = pl.pallas_call(
        _deconv_prelu_kernel,
        out_shape=jax.ShapeDtypeStruct((Mp, CoutF), out_dtype),
        grid_spec=pltpu.PrefetchScalarGridSpec(
            num_scalar_prefetch=0,
            grid=(Mp // tm,),
            in_specs=[
                pl.BlockSpec((tm, Kcp), lambda i: (i, 0)),      # patches tile
                pl.BlockSpec((Kcp, CoutF), lambda i: (0, 0)),   # folded weight (resident)
                pl.BlockSpec((1, CoutF), lambda i: (0, 0)),     # folded bias (resident)
                pl.BlockSpec(memory_space=pltpu.MemorySpace.SMEM),  # PReLU alpha scalar
            ],
            out_specs=pl.BlockSpec((tm, CoutF), lambda i: (i, 0)),
        ),
        compiler_params=pltpu.CompilerParams(
            dimension_semantics=("parallel",),
            vmem_limit_bytes=vmem_budget,
        ),
        cost_estimate=cost,
    )(patches, w_fold, bias_fold, alpha_s)

    # ---- pixel-shuffle epilogue (single reshape/transpose/slice) --------------
    out = out_all[:M].reshape(N, QH, QW, s, s, Cout)
    out = out.transpose(0, 1, 3, 2, 4, 5).reshape(N, QH * s, QW * s, Cout)
    out = out[:, :OH, :OW, :]
    # TODO(synk): a channels-last consumer could take the NHWC bf16 result
    # directly and skip this transpose + f32 cast (kept for PyTorch parity).
    return out.transpose(0, 3, 1, 2).astype(jnp.float32)


def reference_deconv_prelu(x, w, b, alpha, stride, padding):
    """Independent numpy reference matching torch.nn.ConvTranspose2d + PReLU."""
    N, Cin, H, W = x.shape
    _, Cout, K, _ = w.shape
    OH = (H - 1) * stride - 2 * padding + K
    OW = (W - 1) * stride - 2 * padding + K
    out = np.tile(b.reshape(1, Cout, 1, 1), (N, 1, OH, OW)).astype(np.float64)
    for n in range(N):
        for ih in range(H):
            for iw in range(W):
                for kh in range(K):
                    oh = ih * stride - padding + kh
                    if oh < 0 or oh >= OH:
                        continue
                    for kw in range(K):
                        ow = iw * stride - padding + kw
                        if ow < 0 or ow >= OW:
                            continue
                        out[n, :, oh, ow] += x[n, :, ih, iw] @ w[:, :, kh, kw]
    return np.where(out >= 0, out, alpha * out)


if __name__ == "__main__":
    # DeconvBlock(input_size=4, output_size=8, kernel_size=4, stride=2, padding=1)
    N, Cin, Cout, K, stride, padding = 2, 4, 8, 4, 2, 1
    H = W = 16

    key = jax.random.PRNGKey(0)
    k_x, k_w, k_b = jax.random.split(key, 3)
    x = jax.random.normal(k_x, (N, Cin, H, W), dtype=jnp.float32)
    weight = 0.1 * jax.random.normal(k_w, (Cin, Cout, K, K), dtype=jnp.float32)  # torch: [Cin, Cout, kH, kW]
    bias = 0.1 * jax.random.normal(k_b, (Cout,), dtype=jnp.float32)
    alpha = 0.25  # PReLU default init (num_parameters=1)

    out = deconv_block(x, weight, bias, alpha, stride=stride, padding=padding)
    out = jax.block_until_ready(out)

    ref = reference_deconv_prelu(np.asarray(x), np.asarray(weight), np.asarray(bias),
                                 alpha, stride, padding)
    assert out.shape == ref.shape, (out.shape, ref.shape)
    # bf16 operands/stores with f32 accumulation: expect ~1e-3..1e-2 abs error.
    np.testing.assert_allclose(np.asarray(out), ref, rtol=2e-2, atol=2e-2)

    print("KERNEL_OK")
</pallas_src>

<mosaic_0001>
module attributes {stable_mosaic.version = 11 : i64} {
  func.func @_deconv_prelu_kernel(%arg0: i32, %arg1: memref<512x48xbf16, #tpu.memory_space<vmem>>, %arg2: memref<48x32xbf16, #tpu.memory_space<vmem>>, %arg3: memref<1x32xf32, #tpu.memory_space<vmem>>, %arg4: memref<1xf32, #tpu.memory_space<smem>>, %arg5: memref<512x32xbf16, #tpu.memory_space<vmem>>) attributes {dimension_semantics = [#tpu.dimension_semantics<parallel>], iteration_bounds = array<i64: 1>, scalar_prefetch = 0 : i64, scratch_operands = 0 : i64, tpu.core_type = #tpu.core_type<tc>, window_params = [{transform_indices = @transform_0, window_bounds = array<i64: 512, 48>}, {pipeline_mode = #tpu.pipeline_mode<synchronous>, transform_indices = @transform_1, window_bounds = array<i64: 48, 32>}, {pipeline_mode = #tpu.pipeline_mode<synchronous>, transform_indices = @transform_2, window_bounds = array<i64: 1, 32>}, {transform_indices = @transform_3, window_bounds = array<i64: 1>}, {transform_indices = @transform_4, window_bounds = array<i64: 512, 32>}]} {
    %c0 = arith.constant 0 : index
    %c0_0 = arith.constant 0 : index
    %0 = vector.load %arg1[%c0, %c0_0] : memref<512x48xbf16, #tpu.memory_space<vmem>>, vector<512x48xbf16>
    %c0_1 = arith.constant 0 : index
    %c0_2 = arith.constant 0 : index
    %1 = vector.load %arg2[%c0_1, %c0_2] : memref<48x32xbf16, #tpu.memory_space<vmem>>, vector<48x32xbf16>
    %cst = arith.constant dense<0.000000e+00> : vector<512x32xf32>
    %2 = tpu.matmul %0, %1, %cst {dimension_numbers = #tpu.dot_dimension_numbers<[1], [0], [0], [1], [0, 0, 1, 1], [], []>} : vector<512x48xbf16>, vector<48x32xbf16>, vector<512x32xf32> -> vector<512x32xf32>
    %c0_3 = arith.constant 0 : index
    %c0_4 = arith.constant 0 : index
    %3 = vector.load %arg3[%c0_3, %c0_4] : memref<1x32xf32, #tpu.memory_space<vmem>>, vector<1x32xf32>
    %4 = vector.broadcast %3 : vector<1x32xf32> to vector<512x32xf32>
    %5 = arith.addf %2, %4 : vector<512x32xf32>
    %c0_5 = arith.constant 0 : index
    %6 = memref.load %arg4[%c0_5] : memref<1xf32, #tpu.memory_space<smem>>
    %cst_6 = arith.constant 0.000000e+00 : f32
    %7 = vector.broadcast %cst_6 : f32 to vector<512x32xf32>
    %8 = arith.cmpf oge, %5, %7 : vector<512x32xf32>
    %9 = vector.broadcast %6 : f32 to vector<512x32xf32>
    %10 = arith.mulf %9, %5 : vector<512x32xf32>
    %11 = arith.select %8, %5, %10 : vector<512x32xi1>, vector<512x32xf32>
    %12 = arith.truncf %11 : vector<512x32xf32> to vector<512x32xbf16>
    %c0_7 = arith.constant 0 : index
    %c0_8 = arith.constant 0 : index
    %13 = vector.load %arg5[%c0_7, %c0_8] : memref<512x32xbf16, #tpu.memory_space<vmem>>, vector<512x32xbf16>
    tpu.vector_store %arg5[%c0_7, %c0_8], %12 {strides = array<i32>} : memref<512x32xbf16, #tpu.memory_space<vmem>>, vector<512x32xbf16>,
    return
  }
  func.func @transform_0(%arg0: i32) -> (i32, i32) {
    %c0_i32 = arith.constant 0 : i32
    %c0_i32_0 = arith.constant 0 : i32
    return %arg0, %c0_i32 : i32, i32
  }
  func.func @transform_1(%arg0: i32) -> (i32, i32) {
    %c0_i32 = arith.constant 0 : i32
    %c0_i32_0 = arith.constant 0 : i32
    %c0_i32_1 = arith.constant 0 : i32
    return %c0_i32, %c0_i32_0 : i32, i32
  }
  func.func @transform_2(%arg0: i32) -> (i32, i32) {
    %c0_i32 = arith.constant 0 : i32
    %c0_i32_0 = arith.constant 0 : i32
    %c0_i32_1 = arith.constant 0 : i32
    return %c0_i32, %c0_i32_0 : i32, i32
  }
  func.func @transform_3(%arg0: i32) -> i32 {
    %c0_i32 = arith.constant 0 : i32
    %c0_i32_0 = arith.constant 0 : i32
    return %c0_i32 : i32
  }
  func.func @transform_4(%arg0: i32) -> (i32, i32) {
    %c0_i32 = arith.constant 0 : i32
    %c0_i32_0 = arith.constant 0 : i32
    return %arg0, %c0_i32 : i32, i32
  }
}

</mosaic_0001>

<llo_original>
// kernel: tile.9
$region0: #{tile.9}
  %s0 = inlined_call_operand.vmem [shape: f32[4,8], index: 0, kind: input, shape index: {}]
  %s1 = inlined_call_operand.vmem [shape: f32[1,32], index: 1, kind: output, shape index: {}]
  $region1: #{tile.9} parent=0
    #allocation0 [shape = 'u8[4096]{0}', space=vmem, size = 0x1000, scoped, tag = 'scoped mem for output reshape']
    #allocation1 [shape = 'u8[4096]{0}', space=vmem, size = 0x1000, scoped, tag = 'scoped mem for input reshape']
    %s3 = sshll.u32 1, 4
    %s4 = ssub.s32 %s3, 1
    %v5 = vld [vmem:[%s0] sm:%s4]
    %6 = vst [vmem:[#allocation1] sm:%s4] %v5
    %v7 = vld [vmem:[#allocation1] sm:$0x1]
    %vm8 = vcmask 64512
    %9 = vst.msk [vmem:[#allocation0] sm:$0x1] %vm8, %v7
    %s10 = scalar_lea.vmem [#allocation1], 3
    %v11 = vld [vmem:[%s10] sm:$0x1]
    %12 = vrot.lane.b32.xlu0 %v11, 24
    %v13 = vpop.permute.xlu0 %12
    %vm14 = vcmask 261312
    %15 = vst.msk [vmem:[#allocation0] sm:$0x1] %vm14, %v13
    %s16 = scalar_lea.vmem [#allocation1], 2
    %v17 = vld [vmem:[%s16] sm:$0x1]
    %18 = vrot.lane.b32.xlu0 %v17, 16
    %v19 = vpop.permute.xlu0 %18
    %vm20 = vcmask 195712
    %21 = vst.msk [vmem:[#allocation0] sm:$0x1] %vm20, %v19
    %s22 = scalar_lea.vmem [#allocation1], 1
    %v23 = vld [vmem:[%s22] sm:$0x1]
    %24 = vrot.lane.b32.xlu0 %v23, 8
    %v25 = vpop.permute.xlu0 %24
    %vm26 = vcmask 130112
    %27 = vst.msk [vmem:[#allocation0] sm:$0x1] %vm26, %v25
    %s29 = sshll.u32 1, 1
    %s30 = ssub.s32 %s29, 1
    %v32 = vld [vmem:[#allocation0] sm:%s30]
    %s33 = sshll.u32 1, 1
    %s34 = ssub.s32 %s33, 1
    %35 = vst [vmem:[%s1] sm:%s34] %v32

// kernel: tile.8
$region0: #{tile.8}
  #allocation0 [shape = 's32[1]{0}', space=sflag, size = 0x4, scoped, tag = 'scoped memory for tile.8']
  %s0 = inlined_call_operand.vmem [shape: f32[8], index: 0, kind: input, shape index: {}]
  %s1 = inlined_call_operand.vmem [shape: f32[4,8], index: 1, kind: output, shape index: {}]
  // Predicated region
  $region2: #{tile.8} parent=0 // pred_check
    _
  $region3: #{tile.8} parent=0 // pred_check_branch
    %3 = sbr.rel (0) target = $region5
  $region4: #{tile.8} parent=0 // pred_region
    _
  $region5: #{tile.8} parent=0 // pred_fallthru
    _
  %v4 = vld [vmem:[%s0] ss:$0 sm:$0xff]
  %5 = vst [vmem:[%s1] sm:$0xf] %v4

// kernel: deconv_block.1
$region0: #{deconv_block.1}
  #allocation0 [shape = 'u32[]', space=smem, size = 0x4, offset = 0x4, fixed_abs, tag = 'smem constant byte address 0x4 - core index']
  #allocation1 [shape = 'u32[144,128]{1,0:T(1,128)}', space=vmem, size = 0x12000, scoped, tag = 'internal scratch']
  #allocation2 [shape = 'f32[1]{0:T(128)S(6)}', space=smem, size = 0x200, scoped, tag = 'scoped memory for deconv_block.1']
  %s0 = inlined_call_operand.vmem [shape: bf16[512,48], index: 0, kind: input, shape index: {}]
  %s1 = inlined_call_operand.vmem [shape: bf16[48,32], index: 1, kind: input, shape index: {}]
  %s2 = inlined_call_operand.vmem [shape: f32[1,32], index: 2, kind: input, shape index: {}]
  %s3 = inlined_call_operand.<no memory space> [shape: f32[1], index: 3, kind: input, shape index: {}]
  %s4 = inlined_call_operand.vmem [shape: bf16[512,32], index: 4, kind: output, shape index: {}]
  %s5 = sld [smem:[#allocation0]]
  $region26: #{deconv_block.1} parent=0
    _
  %s7 = ssub.s32 1, %s5
  %s8 = scalar_select 0, %s7, %s5
  %9 = sst [smem:[#allocation2]] %s3
  // Predicated region
  $region2: #{deconv_block.1} parent=0 // pred_check
    _
  $region3: #{deconv_block.1} parent=0 // pred_check_branch
    %11 = sbr.rel (0) target = $region5
  $region4: #{deconv_block.1} parent=0 // pred_region
    _
  $region5: #{deconv_block.1} parent=0 // pred_fallthru
    _
  // Predicated region
  $region6: #{deconv_block.1} parent=0 // pred_check
    _
  $region7: #{deconv_block.1} parent=0 // pred_check_branch
    %13 = sbr.rel (0) target = $region9
  $region8: #{deconv_block.1} parent=0 // pred_region
    _
  $region9: #{deconv_block.1} parent=0 // pred_fallthru
    _
  // Predicated region
  $region10: #{deconv_block.1} parent=0 // pred_check
    _
  $region11: #{deconv_block.1} parent=0 // pred_check_branch
    %15 = sbr.rel (0) target = $region13
  $region12: #{deconv_block.1} parent=0 // pred_region
    _
  $region13: #{deconv_block.1} parent=0 // pred_fallthru
    _
  // Predicated region
  $region14: #{deconv_block.1} parent=0 // pred_check
    _
  $region15: #{deconv_block.1} parent=0 // pred_check_branch
    %17 = sbr.rel (0) target = $region17
  $region16: #{deconv_block.1} parent=0 // pred_region
    _
  $region17: #{deconv_block.1} parent=0 // pred_fallthru
    _
  %v19 = vld [vmem:[%s0] sm:$0xf]
  %v20 = vld [vmem:[%s0 + $0x4] sm:$0xf]
  %v21 = vld [vmem:[%s0 + $0x8] sm:$0xf]
  %v22 = vld [vmem:[%s0 + $0xc] sm:$0xf]
  %v23 = vld [vmem:[%s0 + $0x10] sm:$0xf]
  %v24 = vld [vmem:[%s0 + $0x14] sm:$0xf]
  %v25 = vld [vmem:[%s0 + $0x18] sm:$0xf]
  %v26 = vld [vmem:[%s0 + $0x1c] sm:$0xf]
  %v27 = vld [vmem:[%s0 + $0x20] sm:$0xf]
  %v28 = vld [vmem:[%s0 + $0x24] sm:$0xf]
  %v29 = vld [vmem:[%s0 + $0x28] sm:$0xf]
  %v30 = vld [vmem:[%s0 + $0x2c] sm:$0xf]
  %v31 = vld [vmem:[%s0 + $0x30] sm:$0xf]
  %v32 = vld [vmem:[%s0 + $0x34] sm:$0xf]
  %v33 = vld [vmem:[%s0 + $0x38] sm:$0xf]
  %v34 = vld [vmem:[%s0 + $0x3c] sm:$0xf]
  %v35 = vld [vmem:[%s0 + $0x40] sm:$0xf]
  %v36 = vld [vmem:[%s0 + $0x44] sm:$0xf]
  %v37 = vld [vmem:[%s0 + $0x48] sm:$0xf]
  %v38 = vld [vmem:[%s0 + $0x4c] sm:$0xf]
  %v39 = vld [vmem:[%s0 + $0x50] sm:$0xf]
  %v40 = vld [vmem:[%s0 + $0x54] sm:$0xf]
  %v41 = vld [vmem:[%s0 + $0x58] sm:$0xf]
  %v42 = vld [vmem:[%s0 + $0x5c] sm:$0xf]
  %v43 = vld [vmem:[%s0 + $0x60] sm:$0xf]
  %v44 = vld [vmem:[%s0 + $0x64] sm:$0xf]
  %v45 = vld [vmem:[%s0 + $0x68] sm:$0xf]
  %v46 = vld [vmem:[%s0 + $0x6c] sm:$0xf]
  %v47 = vld [vmem:[%s0 + $0x70] sm:$0xf]
  %v48 = vld [vmem:[%s0 + $0x74] sm:$0xf]
  %v49 = vld [vmem:[%s0 + $0x78] sm:$0xf]
  %v50 = vld [vmem:[%s0 + $0x7c] sm:$0xf]
  %v51 = vld [vmem:[%s0 + $0x80] sm:$0xf]
  %v52 = vld [vmem:[%s0 + $0x84] sm:$0xf]
  %v53 = vld [vmem:[%s0 + $0x88] sm:$0xf]
  %v54 = vld [vmem:[%s0 + $0x8c] sm:$0xf]
  %v55 = vld [vmem:[%s0 + $0x90] sm:$0xf]
  %v56 = vld [vmem:[%s0 + $0x94] sm:$0xf]
  %v57 = vld [vmem:[%s0 + $0x98] sm:$0xf]
  %v58 = vld [vmem:[%s0 + $0x9c] sm:$0xf]
  %v59 = vld [vmem:[%s0 + $0xa0] sm:$0xf]
  %v60 = vld [vmem:[%s0 + $0xa4] sm:$0xf]
  %v61 = vld [vmem:[%s0 + $0xa8] sm:$0xf]
  %v62 = vld [vmem:[%s0 + $0xac] sm:$0xf]
  %v63 = vld [vmem:[%s0 + $0xb0] sm:$0xf]
  %v64 = vld [vmem:[%s0 + $0xb4] sm:$0xf]
  %v65 = vld [vmem:[%s0 + $0xb8] sm:$0xf]
  %v66 = vld [vmem:[%s0 + $0xbc] sm:$0xf]
  %v67 = vld [vmem:[%s0 + $0xc0] sm:$0xf]
  %v68 = vld [vmem:[%s0 + $0xc4] sm:$0xf]
  %v69 = vld [vmem:[%s0 + $0xc8] sm:$0xf]
  %v70 = vld [vmem:[%s0 + $0xcc] sm:$0xf]
  %v71 = vld [vmem:[%s0 + $0xd0] sm:$0xf]
  %v72 = vld [vmem:[%s0 + $0xd4] sm:$0xf]
  %v73 = vld [vmem:[%s0 + $0xd8] sm:$0xf]
  %v74 = vld [vmem:[%s0 + $0xdc] sm:$0xf]
  %v75 = vld [vmem:[%s0 + $0xe0] sm:$0xf]
  %v76 = vld [vmem:[%s0 + $0xe4] sm:$0xf]
  %v77 = vld [vmem:[%s0 + $0xe8] sm:$0xf]
  %v78 = vld [vmem:[%s0 + $0xec] sm:$0xf]
  %v79 = vld [vmem:[%s0 + $0xf0] sm:$0xf]
  %v80 = vld [vmem:[%s0 + $0xf4] sm:$0xf]
  %v81 = vld [vmem:[%s0 + $0xf8] sm:$0xf]
  %v82 = vld [vmem:[%s0 + $0xfc] sm:$0xf]
  %v83 = vld [vmem:[%s1] sm:$0xf]
  %v84 = vld [vmem:[%s1 + $0x4] sm:$0xf]
  %v85 = vld [vmem:[%s1 + $0x8] sm:$0xf]
  %v86 = vld [vmem:[%s1 + $0xc] sm:$0xf]
  %v87 = vld [vmem:[%s1 + $0x10] sm:$0xf]
  %v88 = vld [vmem:[%s1 + $0x14] sm:$0xf]
  %v89 = vld [vmem:[%s2] sm:$0x1]
  %v91 = vlaneseq
  %v92 = vshrl.u32 %v91, 7
  %v93 = vsub.s32 0, %v92
  %v94 = vrot.slane %v89, %v93
  %v160 = vunpack.c.l.b16 %v19
  %v161 = vunpack.c.l.b16 %v20
  %v162 = vunpack.c.l.b16 %v21
  %v163 = vunpack.c.l.b16 %v22
  %v164 = vunpack.c.l.b16 %v23
  %v165 = vunpack.c.l.b16 %v24
  %v166 = vunpack.c.l.b16 %v25
  %v167 = vunpack.c.l.b16 %v26
  %v168 = vunpack.c.l.b16 %v27
  %v169 = vunpack.c.l.b16 %v28
  %v170 = vunpack.c.l.b16 %v29
  %v171 = vunpack.c.l.b16 %v30
  %v172 = vunpack.c.l.b16 %v31
  %v173 = vunpack.c.l.b16 %v32
  %v174 = vunpack.c.l.b16 %v33
  %v175 = vunpack.c.l.b16 %v34
  %v176 = vunpack.c.l.b16 %v35
  %v177 = vunpack.c.l.b16 %v36
  %v178 = vunpack.c.l.b16 %v37
  %v179 = vunpack.c.l.b16 %v38
  %v180 = vunpack.c.l.b16 %v39
  %v181 = vunpack.c.l.b16 %v40
  %v182 = vunpack.c.l.b16 %v41
  %v183 = vunpack.c.l.b16 %v42
  %v184 = vunpack.c.l.b16 %v43
  %v185 = vunpack.c.l.b16 %v44
  %v186 = vunpack.c.l.b16 %v45
  %v187 = vunpack.c.l.b16 %v46
  %v188 = vunpack.c.l.b16 %v47
  %v189 = vunpack.c.l.b16 %v48
  %v190 = vunpack.c.l.b16 %v49
  %v191 = vunpack.c.l.b16 %v50
  %v192 = vunpack.c.l.b16 %v51
  %v193 = vunpack.c.l.b16 %v52
  %v194 = vunpack.c.l.b16 %v53
  %v195 = vunpack.c.l.b16 %v54
  %v196 = vunpack.c.l.b16 %v55
  %v197 = vunpack.c.l.b16 %v56
  %v198 = vunpack.c.l.b16 %v57
  %v199 = vunpack.c.l.b16 %v58
  %v200 = vunpack.c.l.b16 %v59
  %v201 = vunpack.c.l.b16 %v60
  %v202 = vunpack.c.l.b16 %v61
  %v203 = vunpack.c.l.b16 %v62
  %v204 = vunpack.c.l.b16 %v63
  %v205 = vunpack.c.l.b16 %v64
  %v206 = vunpack.c.l.b16 %v65
  %v207 = vunpack.c.l.b16 %v66
  %v208 = vunpack.c.l.b16 %v67
  %v209 = vunpack.c.l.b16 %v68
  %v210 = vunpack.c.l.b16 %v69
  %v211 = vunpack.c.l.b16 %v70
  %v212 = vunpack.c.l.b16 %v71
  %v213 = vunpack.c.l.b16 %v72
  %v214 = vunpack.c.l.b16 %v73
  %v215 = vunpack.c.l.b16 %v74
  %v216 = vunpack.c.l.b16 %v75
  %v217 = vunpack.c.l.b16 %v76
  %v218 = vunpack.c.l.b16 %v77
  %v219 = vunpack.c.l.b16 %v78
  %v220 = vunpack.c.l.b16 %v79
  %v221 = vunpack.c.l.b16 %v80
  %v222 = vunpack.c.l.b16 %v81
  %v223 = vunpack.c.l.b16 %v82
  %v224 = vpack.c.b16 %v161, %v160
  %v225 = vpack.c.b16 %v163, %v162
  %v226 = vpack.c.b16 %v165, %v164
  %v227 = vpack.c.b16 %v167, %v166
  %v228 = vpack.c.b16 %v169, %v168
  %v229 = vpack.c.b16 %v171, %v170
  %v230 = vpack.c.b16 %v173, %v172
  %v231 = vpack.c.b16 %v175, %v174
  %v232 = vpack.c.b16 %v177, %v176
  %v233 = vpack.c.b16 %v179, %v178
  %v234 = vpack.c.b16 %v181, %v180
  %v235 = vpack.c.b16 %v183, %v182
  %v236 = vpack.c.b16 %v185, %v184
  %v237 = vpack.c.b16 %v187, %v186
  %v238 = vpack.c.b16 %v189, %v188
  %v239 = vpack.c.b16 %v191, %v190
  %v240 = vpack.c.b16 %v193, %v192
  %v241 = vpack.c.b16 %v195, %v194
  %v242 = vpack.c.b16 %v197, %v196
  %v243 = vpack.c.b16 %v199, %v198
  %v244 = vpack.c.b16 %v201, %v200
  %v245 = vpack.c.b16 %v203, %v202
  %v246 = vpack.c.b16 %v205, %v204
  %v247 = vpack.c.b16 %v207, %v206
  %v248 = vpack.c.b16 %v209, %v208
  %v249 = vpack.c.b16 %v211, %v210
  %v250 = vpack.c.b16 %v213, %v212
  %v251 = vpack.c.b16 %v215, %v214
  %v252 = vpack.c.b16 %v217, %v216
  %v253 = vpack.c.b16 %v219, %v218
  %v254 = vpack.c.b16 %v221, %v220
  %v255 = vpack.c.b16 %v223, %v222
  %v262 = vunpack.c.l.b16 %v83
  %v263 = vunpack.c.l.b16 %v84
  %v264 = vunpack.c.l.b16 %v85
  %v265 = vunpack.c.l.b16 %v86
  %v266 = vunpack.c.l.b16 %v87
  %v267 = vunpack.c.l.b16 %v88
  %v268 = vpack.c.b16 %v263, %v262
  %v269 = vpack.c.b16 %v265, %v264
  %v270 = vpack.c.b16 %v267, %v266
  %vm274 = vcmask 392192
  %v276 = vsel %vm274, %v224, 0
  %v279 = vsel %vm274, %v225, 0
  %v282 = vsel %vm274, %v226, 0
  %v285 = vsel %vm274, %v227, 0
  %v288 = vsel %vm274, %v228, 0
  %v291 = vsel %vm274, %v229, 0
  %v294 = vsel %vm274, %v230, 0
  %v297 = vsel %vm274, %v231, 0
  %v300 = vsel %vm274, %v232, 0
  %v303 = vsel %vm274, %v233, 0
  %v306 = vsel %vm274, %v234, 0
  %v309 = vsel %vm274, %v235, 0
  %v312 = vsel %vm274, %v236, 0
  %v315 = vsel %vm274, %v237, 0
  %v318 = vsel %vm274, %v238, 0
  %v321 = vsel %vm274, %v239, 0
  %v324 = vsel %vm274, %v240, 0
  %v327 = vsel %vm274, %v241, 0
  %v330 = vsel %vm274, %v242, 0
  %v333 = vsel %vm274, %v243, 0
  %v336 = vsel %vm274, %v244, 0
  %v339 = vsel %vm274, %v245, 0
  %v342 = vsel %vm274, %v246, 0
  %v345 = vsel %vm274, %v247, 0
  %v348 = vsel %vm274, %v248, 0
  %v351 = vsel %vm274, %v249, 0
  %v354 = vsel %vm274, %v250, 0
  %v357 = vsel %vm274, %v251, 0
  %v360 = vsel %vm274, %v252, 0
  %v363 = vsel %vm274, %v253, 0
  %v366 = vsel %vm274, %v254, 0
  %v369 = vsel %vm274, %v255, 0
  %371 = vmatprep.subr.bf16.mxu0 0
  %372 = vmatpush1.bf16.msra.mxu0 0
  %373 = vmatprep.subr.bf16.mxu0 0
  %374 = vmatpush1.bf16.msra.mxu0 0
  %375 = vmatprep.subr.bf16.mxu0 0
  %376 = vmatpush1.bf16.msra.mxu0 0
  %377 = vmatprep.subr.bf16.mxu0 0
  %378 = vmatpush1.bf16.msra.mxu0 0
  %379 = vmatprep.subr.bf16.mxu0 0
  %380 = vmatpush1.bf16.msra.mxu0 0
  %381 = vmatprep.subr.bf16.mxu0 0
  %382 = vmatpush1.bf16.msra.mxu0 %v270
  %383 = vmatprep.subr.bf16.mxu0 0
  %384 = vmatpush1.bf16.msra.mxu0 %v269
  %385 = vmatprep.subr.bf16.mxu0 0
  %386 = vmatpush1.bf16.msra.mxu0 %v268
  %387 = vmatprep.subr.bf16.mxu0 0
  %388 = vmatpush2.bf16.msra.mxu0 0
  %389 = vmatprep.subr.bf16.mxu0 0
  %390 = vmatpush2.bf16.msra.mxu0 0
  %391 = vmatprep.subr.bf16.mxu0 0
  %392 = vmatpush2.bf16.msra.mxu0 0
  %393 = vmatprep.subr.bf16.mxu0 0
  %394 = vmatpush2.bf16.msra.mxu0 0
  %395 = vmatprep.subr.bf16.mxu0 0
  %396 = vmatpush2.bf16.msra.mxu0 0
  %397 = vmatprep.subr.bf16.mxu0 0
  %398 = vmatpush2.bf16.msra.mxu0 0
  %399 = vmatprep.subr.bf16.mxu0 0
  %400 = vmatpush2.bf16.msra.mxu0 0
  %401 = vmatprep.subr.bf16.mxu0 0
  %402 = vmatpush2.bf16.msra.mxu0 0
  %403 = vmatprep.mubr.bf16.mxu0 0
  %404 = vmatmul.mubr.bf16.gmra.mxu0 %v276
  %v405 = vpop.f32.mrf.mxu0
  %v406 = vadd.f32 %v94, %v405
  %v407 = vpop.f32.mrf.mxu0
  %v408 = vpop.f32.mrf.mxu0
  %v409 = vadd.f32 %v94, %v408
  %v410 = vpop.f32.mrf.mxu0
  %411 = vmatprep.mubr.bf16.mxu0 0
  %412 = vmatmul.mubr.bf16.gmra.mxu0 %v279
  %v413 = vpop.f32.mrf.mxu0
  %v414 = vadd.f32 %v94, %v413
  %v415 = vpop.f32.mrf.mxu0
  %v416 = vpop.f32.mrf.mxu0
  %v417 = vadd.f32 %v94, %v416
  %v418 = vpop.f32.mrf.mxu0
  %419 = vmatprep.mubr.bf16.mxu0 0
  %420 = vmatmul.mubr.bf16.gmra.mxu0 %v282
  %v421 = vpop.f32.mrf.mxu0
  %v422 = vadd.f32 %v94, %v421
  %v423 = vpop.f32.mrf.mxu0
  %v424 = vpop.f32.mrf.mxu0
  %v425 = vadd.f32 %v94, %v424
  %v426 = vpop.f32.mrf.mxu0
  %427 = vmatprep.mubr.bf16.mxu0 0
  %428 = vmatmul.mubr.bf16.gmra.mxu0 %v285
  %v429 = vpop.f32.mrf.mxu0
  %v430 = vadd.f32 %v94, %v429
  %v431 = vpop.f32.mrf.mxu0
  %v432 = vpop.f32.mrf.mxu0
  %v433 = vadd.f32 %v94, %v432
  %v434 = vpop.f32.mrf.mxu0
  %435 = vmatprep.mubr.bf16.mxu0 0
  %436 = vmatmul.mubr.bf16.gmra.mxu0 %v288
  %v437 = vpop.f32.mrf.mxu0
  %v438 = vadd.f32 %v94, %v437
  %v439 = vpop.f32.mrf.mxu0
  %v440 = vpop.f32.mrf.mxu0
  %v441 = vadd.f32 %v94, %v440
  %v442 = vpop.f32.mrf.mxu0
  %443 = vmatprep.mubr.bf16.mxu0 0
  %444 = vmatmul.mubr.bf16.gmra.mxu0 %v291
  %v445 = vpop.f32.mrf.mxu0
  %v446 = vadd.f32 %v94, %v445
  %v447 = vpop.f32.mrf.mxu0
  %v448 = vpop.f32.mrf.mxu0
  %v449 = vadd.f32 %v94, %v448
  %v450 = vpop.f32.mrf.mxu0
  %451 = vmatprep.mubr.bf16.mxu0 0
  %452 = vmatmul.mubr.bf16.gmra.mxu0 %v294
  %v453 = vpop.f32.mrf.mxu0
  %v454 = vadd.f32 %v94, %v453
  %v455 = vpop.f32.mrf.mxu0
  %v456 = vpop.f32.mrf.mxu0
  %v457 = vadd.f32 %v94, %v456
  %v458 = vpop.f32.mrf.mxu0
  %459 = vmatprep.mubr.bf16.mxu0 0
  %460 = vmatmul.mubr.bf16.gmra.mxu0 %v297
  %v461 = vpop.f32.mrf.mxu0
  %v462 = vadd.f32 %v94, %v461
  %v463 = vpop.f32.mrf.mxu0
  %v464 = vpop.f32.mrf.mxu0
  %v465 = vadd.f32 %v94, %v464
  %v466 = vpop.f32.mrf.mxu0
  %467 = vmatprep.mubr.bf16.mxu0 0
  %468 = vmatmul.mubr.bf16.gmra.mxu0 %v300
  %v469 = vpop.f32.mrf.mxu0
  %v470 = vadd.f32 %v94, %v469
  %v471 = vpop.f32.mrf.mxu0
  %v472 = vpop.f32.mrf.mxu0
  %v473 = vadd.f32 %v94, %v472
  %v474 = vpop.f32.mrf.mxu0
  %475 = vmatprep.mubr.bf16.mxu0 0
  %476 = vmatmul.mubr.bf16.gmra.mxu0 %v303
  %v477 = vpop.f32.mrf.mxu0
  %v478 = vadd.f32 %v94, %v477
  %v479 = vpop.f32.mrf.mxu0
  %v480 = vpop.f32.mrf.mxu0
  %v481 = vadd.f32 %v94, %v480
  %v482 = vpop.f32.mrf.mxu0
  %483 = vmatprep.mubr.bf16.mxu0 0
  %484 = vmatmul.mubr.bf16.gmra.mxu0 %v306
  %v485 = vpop.f32.mrf.mxu0
  %v486 = vadd.f32 %v94, %v485
  %v487 = vpop.f32.mrf.mxu0
  %v488 = vpop.f32.mrf.mxu0
  %v489 = vadd.f32 %v94, %v488
  %v490 = vpop.f32.mrf.mxu0
  %491 = vmatprep.mubr.bf16.mxu0 0
  %492 = vmatmul.mubr.bf16.gmra.mxu0 %v309
  %v493 = vpop.f32.mrf.mxu0
  %v494 = vadd.f32 %v94, %v493
  %v495 = vpop.f32.mrf.mxu0
  %v496 = vpop.f32.mrf.mxu0
  %v497 = vadd.f32 %v94, %v496
  %v498 = vpop.f32.mrf.mxu0
  %499 = vmatprep.mubr.bf16.mxu0 0
  %500 = vmatmul.mubr.bf16.gmra.mxu0 %v312
  %v501 = vpop.f32.mrf.mxu0
  %v502 = vadd.f32 %v94, %v501
  %v503 = vpop.f32.mrf.mxu0
  %v504 = vpop.f32.mrf.mxu0
  %v505 = vadd.f32 %v94, %v504
  %v506 = vpop.f32.mrf.mxu0
  %507 = vmatprep.mubr.bf16.mxu0 0
  %508 = vmatmul.mubr.bf16.gmra.mxu0 %v315
  %v509 = vpop.f32.mrf.mxu0
  %v510 = vadd.f32 %v94, %v509
  %v511 = vpop.f32.mrf.mxu0
  %v512 = vpop.f32.mrf.mxu0
  %v513 = vadd.f32 %v94, %v512
  %v514 = vpop.f32.mrf.mxu0
  %515 = vmatprep.mubr.bf16.mxu0 0
  %516 = vmatmul.mubr.bf16.gmra.mxu0 %v318
  %v517 = vpop.f32.mrf.mxu0
  %v518 = vadd.f32 %v94, %v517
  %v519 = vpop.f32.mrf.mxu0
  %v520 = vpop.f32.mrf.mxu0
  %v521 = vadd.f32 %v94, %v520
  %v522 = vpop.f32.mrf.mxu0
  %523 = vmatprep.mubr.bf16.mxu0 0
  %524 = vmatmul.mubr.bf16.gmra.mxu0 %v321
  %v525 = vpop.f32.mrf.mxu0
  %v526 = vadd.f32 %v94, %v525
  %v527 = vpop.f32.mrf.mxu0
  %v528 = vpop.f32.mrf.mxu0
  %v529 = vadd.f32 %v94, %v528
  %v530 = vpop.f32.mrf.mxu0
  %531 = vmatprep.mubr.bf16.mxu0 0
  %532 = vmatmul.mubr.bf16.gmra.mxu0 %v324
  %v533 = vpop.f32.mrf.mxu0
  %v534 = vadd.f32 %v94, %v533
  %v535 = vpop.f32.mrf.mxu0
  %v536 = vpop.f32.mrf.mxu0
  %v537 = vadd.f32 %v94, %v536
  %v538 = vpop.f32.mrf.mxu0
  %539 = vmatprep.mubr.bf16.mxu0 0
  %540 = vmatmul.mubr.bf16.gmra.mxu0 %v327
  %v541 = vpop.f32.mrf.mxu0
  %v542 = vadd.f32 %v94, %v541
  %v543 = vpop.f32.mrf.mxu0
  %v544 = vpop.f32.mrf.mxu0
  %v545 = vadd.f32 %v94, %v544
  %v546 = vpop.f32.mrf.mxu0
  %547 = vmatprep.mubr.bf16.mxu0 0
  %548 = vmatmul.mubr.bf16.gmra.mxu0 %v330
  %v549 = vpop.f32.mrf.mxu0
  %v550 = vadd.f32 %v94, %v549
  %v551 = vpop.f32.mrf.mxu0
  %v552 = vpop.f32.mrf.mxu0
  %v553 = vadd.f32 %v94, %v552
  %v554 = vpop.f32.mrf.mxu0
  %555 = vmatprep.mubr.bf16.mxu0 0
  %556 = vmatmul.mubr.bf16.gmra.mxu0 %v333
  %v557 = vpop.f32.mrf.mxu0
  %v558 = vadd.f32 %v94, %v557
  %v559 = vpop.f32.mrf.mxu0
  %v560 = vpop.f32.mrf.mxu0
  %v561 = vadd.f32 %v94, %v560
  %v562 = vpop.f32.mrf.mxu0
  %563 = vmatprep.mubr.bf16.mxu0 0
  %564 = vmatmul.mubr.bf16.gmra.mxu0 %v336
  %v565 = vpop.f32.mrf.mxu0
  %v566 = vadd.f32 %v94, %v565
  %v567 = vpop.f32.mrf.mxu0
  %v568 = vpop.f32.mrf.mxu0
  %v569 = vadd.f32 %v94, %v568
  %v570 = vpop.f32.mrf.mxu0
  %571 = vmatprep.mubr.bf16.mxu0 0
  %572 = vmatmul.mubr.bf16.gmra.mxu0 %v339
  %v573 = vpop.f32.mrf.mxu0
  %v574 = vadd.f32 %v94, %v573
  %v575 = vpop.f32.mrf.mxu0
  %v576 = vpop.f32.mrf.mxu0
  %v577 = vadd.f32 %v94, %v576
  %v578 = vpop.f32.mrf.mxu0
  %579 = vmatprep.mubr.bf16.mxu0 0
  %580 = vmatmul.mubr.bf16.gmra.mxu0 %v342
  %v581 = vpop.f32.mrf.mxu0
  %v582 = vadd.f32 %v94, %v581
  %v583 = vpop.f32.mrf.mxu0
  %v584 = vpop.f32.mrf.mxu0
  %v585 = vadd.f32 %v94, %v584
  %v586 = vpop.f32.mrf.mxu0
  %587 = vmatprep.mubr.bf16.mxu0 0
  %588 = vmatmul.mubr.bf16.gmra.mxu0 %v345
  %v589 = vpop.f32.mrf.mxu0
  %v590 = vadd.f32 %v94, %v589
  %v591 = vpop.f32.mrf.mxu0
  %v592 = vpop.f32.mrf.mxu0
  %v593 = vadd.f32 %v94, %v592
  %v594 = vpop.f32.mrf.mxu0
  %595 = vmatprep.mubr.bf16.mxu0 0
  %596 = vmatmul.mubr.bf16.gmra.mxu0 %v348
  %v597 = vpop.f32.mrf.mxu0
  %v598 = vadd.f32 %v94, %v597
  %v599 = vpop.f32.mrf.mxu0
  %v600 = vpop.f32.mrf.mxu0
  %v601 = vadd.f32 %v94, %v600
  %v602 = vpop.f32.mrf.mxu0
  %603 = vmatprep.mubr.bf16.mxu0 0
  %604 = vmatmul.mubr.bf16.gmra.mxu0 %v351
  %v605 = vpop.f32.mrf.mxu0
  %v606 = vadd.f32 %v94, %v605
  %v607 = vpop.f32.mrf.mxu0
  %v608 = vpop.f32.mrf.mxu0
  %v609 = vadd.f32 %v94, %v608
  %v610 = vpop.f32.mrf.mxu0
  %611 = vmatprep.mubr.bf16.mxu0 0
  %612 = vmatmul.mubr.bf16.gmra.mxu0 %v354
  %v613 = vpop.f32.mrf.mxu0
  %v614 = vadd.f32 %v94, %v613
  %v615 = vpop.f32.mrf.mxu0
  %v616 = vpop.f32.mrf.mxu0
  %v617 = vadd.f32 %v94, %v616
  %v618 = vpop.f32.mrf.mxu0
  %619 = vmatprep.mubr.bf16.mxu0 0
  %620 = vmatmul.mubr.bf16.gmra.mxu0 %v357
  %v621 = vpop.f32.mrf.mxu0
  %v622 = vadd.f32 %v94, %v621
  %v623 = vpop.f32.mrf.mxu0
  %v624 = vpop.f32.mrf.mxu0
  %v625 = vadd.f32 %v94, %v624
  %v626 = vpop.f32.mrf.mxu0
  %627 = vmatprep.mubr.bf16.mxu0 0
  %628 = vmatmul.mubr.bf16.gmra.mxu0 %v360
  %v629 = vpop.f32.mrf.mxu0
  %v630 = vadd.f32 %v94, %v629
  %v631 = vpop.f32.mrf.mxu0
  %v632 = vpop.f32.mrf.mxu0
  %v633 = vadd.f32 %v94, %v632
  %v634 = vpop.f32.mrf.mxu0
  %635 = vmatprep.mubr.bf16.mxu0 0
  %636 = vmatmul.mubr.bf16.gmra.mxu0 %v363
  %v637 = vpop.f32.mrf.mxu0
  %v638 = vadd.f32 %v94, %v637
  %v639 = vpop.f32.mrf.mxu0
  %v640 = vpop.f32.mrf.mxu0
  %v641 = vadd.f32 %v94, %v640
  %v642 = vpop.f32.mrf.mxu0
  %643 = vmatprep.mubr.bf16.mxu0 0
  %644 = vmatmul.mubr.bf16.gmra.mxu0 %v366
  %v645 = vpop.f32.mrf.mxu0
  %v646 = vadd.f32 %v94, %v645
  %v647 = vpop.f32.mrf.mxu0
  %v648 = vpop.f32.mrf.mxu0
  %v649 = vadd.f32 %v94, %v648
  %v650 = vpop.f32.mrf.mxu0
  %651 = vmatprep.mubr.bf16.mxu0 0
  %652 = vmatmul.mubr.bf16.gmra.mxu0 %v369
  %v653 = vpop.f32.mrf.mxu0
  %v654 = vadd.f32 %v94, %v653
  %v655 = vpop.f32.mrf.mxu0
  %v656 = vpop.f32.mrf.mxu0
  %v657 = vadd.f32 %v94, %v656
  %v658 = vpop.f32.mrf.mxu0
  %659 = vdwg.mxu0
  %s660 = sld [smem:[#allocation2]]
  %vm661 = vcmp.ge.f32.partialorder %v406, 0.0
  %vm662 = vcmp.ge.f32.partialorder %v409, 0.0
  %vm663 = vcmp.ge.f32.partialorder %v414, 0.0
  %vm664 = vcmp.ge.f32.partialorder %v417, 0.0
  %vm665 = vcmp.ge.f32.partialorder %v422, 0.0
  %vm666 = vcmp.ge.f32.partialorder %v425, 0.0
  %vm667 = vcmp.ge.f32.partialorder %v430, 0.0
  %vm668 = vcmp.ge.f32.partialorder %v433, 0.0
  %vm669 = vcmp.ge.f32.partialorder %v438, 0.0
  %vm670 = vcmp.ge.f32.partialorder %v441, 0.0
  %vm671 = vcmp.ge.f32.partialorder %v446, 0.0
  %vm672 = vcmp.ge.f32.partialorder %v449, 0.0
  %vm673 = vcmp.ge.f32.partialorder %v454, 0.0
  %vm674 = vcmp.ge.f32.partialorder %v457, 0.0
  %vm675 = vcmp.ge.f32.partialorder %v462, 0.0
  %vm676 = vcmp.ge.f32.partialorder %v465, 0.0
  %vm677 = vcmp.ge.f32.partialorder %v470, 0.0
  %vm678 = vcmp.ge.f32.partialorder %v473, 0.0
  %vm679 = vcmp.ge.f32.partialorder %v478, 0.0
  %vm680 = vcmp.ge.f32.partialorder %v481, 0.0
  %vm681 = vcmp.ge.f32.partialorder %v486, 0.0
  %vm682 = vcmp.ge.f32.partialorder %v489, 0.0
  %vm683 = vcmp.ge.f32.partialorder %v494, 0.0
  %vm684 = vcmp.ge.f32.partialorder %v497, 0.0
  %vm685 = vcmp.ge.f32.partialorder %v502, 0.0
  %vm686 = vcmp.ge.f32.partialorder %v505, 0.0
  %vm687 = vcmp.ge.f32.partialorder %v510, 0.0
  %vm688 = vcmp.ge.f32.partialorder %v513, 0.0
  %vm689 = vcmp.ge.f32.partialorder %v518, 0.0
  %vm690 = vcmp.ge.f32.partialorder %v521, 0.0
  %vm691 = vcmp.ge.f32.partialorder %v526, 0.0
  %vm692 = vcmp.ge.f32.partialorder %v529, 0.0
  %vm693 = vcmp.ge.f32.partialorder %v534, 0.0
  %vm694 = vcmp.ge.f32.partialorder %v537, 0.0
  %vm695 = vcmp.ge.f32.partialorder %v542, 0.0
  %vm696 = vcmp.ge.f32.partialorder %v545, 0.0
  %vm697 = vcmp.ge.f32.partialorder %v550, 0.0
  %vm698 = vcmp.ge.f32.partialorder %v553, 0.0
  %vm699 = vcmp.ge.f32.partialorder %v558, 0.0
  %vm700 = vcmp.ge.f32.partialorder %v561, 0.0
  %vm701 = vcmp.ge.f32.partialorder %v566, 0.0
  %vm702 = vcmp.ge.f32.partialorder %v569, 0.0
  %vm703 = vcmp.ge.f32.partialorder %v574, 0.0
  %vm704 = vcmp.ge.f32.partialorder %v577, 0.0
  %vm705 = vcmp.ge.f32.partialorder %v582, 0.0
  %vm706 = vcmp.ge.f32.partialorder %v585, 0.0
  %vm707 = vcmp.ge.f32.partialorder %v590, 0.0
  %vm708 = vcmp.ge.f32.partialorder %v593, 0.0
  %vm709 = vcmp.ge.f32.partialorder %v598, 0.0
  %vm710 = vcmp.ge.f32.partialorder %v601, 0.0
  %vm711 = vcmp.ge.f32.partialorder %v606, 0.0
  %vm712 = vcmp.ge.f32.partialorder %v609, 0.0
  %vm713 = vcmp.ge.f32.partialorder %v614, 0.0
  %vm714 = vcmp.ge.f32.partialorder %v617, 0.0
  %vm715 = vcmp.ge.f32.partialorder %v622, 0.0
  %vm716 = vcmp.ge.f32.partialorder %v625, 0.0
  %vm717 = vcmp.ge.f32.partialorder %v630, 0.0
  %vm718 = vcmp.ge.f32.partialorder %v633, 0.0
  %vm719 = vcmp.ge.f32.partialorder %v638, 0.0
  %vm720 = vcmp.ge.f32.partialorder %v641, 0.0
  %vm721 = vcmp.ge.f32.partialorder %v646, 0.0
  %vm722 = vcmp.ge.f32.partialorder %v649, 0.0
  %vm723 = vcmp.ge.f32.partialorder %v654, 0.0
  %vm724 = vcmp.ge.f32.partialorder %v657, 0.0
  %v725 = vstv %s660
  %v726 = vmul.f32 %v725, %v406
  %v727 = vmul.f32 %v725, %v409
  %v728 = vmul.f32 %v725, %v414
  %v729 = vmul.f32 %v725, %v417
  %v730 = vmul.f32 %v725, %v422
  %v731 = vmul.f32 %v725, %v425
  %v732 = vmul.f32 %v725, %v430
  %v733 = vmul.f32 %v725, %v433
  %v734 = vmul.f32 %v725, %v438
  %v735 = vmul.f32 %v725, %v441
  %v736 = vmul.f32 %v725, %v446
  %v737 = vmul.f32 %v725, %v449
  %v738 = vmul.f32 %v725, %v454
  %v739 = vmul.f32 %v725, %v457
  %v740 = vmul.f32 %v725, %v462
  %v741 = vmul.f32 %v725, %v465
  %v742 = vmul.f32 %v725, %v470
  %v743 = vmul.f32 %v725, %v473
  %v744 = vmul.f32 %v725, %v478
  %v745 = vmul.f32 %v725, %v481
  %v746 = vmul.f32 %v725, %v486
  %v747 = vmul.f32 %v725, %v489
  %v748 = vmul.f32 %v725, %v494
  %v749 = vmul.f32 %v725, %v497
  %v750 = vmul.f32 %v725, %v502
  %v751 = vmul.f32 %v725, %v505
  %v752 = vmul.f32 %v725, %v510
  %v753 = vmul.f32 %v725, %v513
  %v754 = vmul.f32 %v725, %v518
  %v755 = vmul.f32 %v725, %v521
  %v756 = vmul.f32 %v725, %v526
  %v757 = vmul.f32 %v725, %v529
  %v758 = vmul.f32 %v725, %v534
  %v759 = vmul.f32 %v725, %v537
  %v760 = vmul.f32 %v725, %v542
  %v761 = vmul.f32 %v725, %v545
  %v762 = vmul.f32 %v725, %v550
  %v763 = vmul.f32 %v725, %v553
  %v764 = vmul.f32 %v725, %v558
  %v765 = vmul.f32 %v725, %v561
  %v766 = vmul.f32 %v725, %v566
  %v767 = vmul.f32 %v725, %v569
  %v768 = vmul.f32 %v725, %v574
  %v769 = vmul.f32 %v725, %v577
  %v770 = vmul.f32 %v725, %v582
  %v771 = vmul.f32 %v725, %v585
  %v772 = vmul.f32 %v725, %v590
  %v773 = vmul.f32 %v725, %v593
  %v774 = vmul.f32 %v725, %v598
  %v775 = vmul.f32 %v725, %v601
  %v776 = vmul.f32 %v725, %v606
  %v777 = vmul.f32 %v725, %v609
  %v778 = vmul.f32 %v725, %v614
  %v779 = vmul.f32 %v725, %v617
  %v780 = vmul.f32 %v725, %v622
  %v781 = vmul.f32 %v725, %v625
  %v782 = vmul.f32 %v725, %v630
  %v783 = vmul.f32 %v725, %v633
  %v784 = vmul.f32 %v725, %v638
  %v785 = vmul.f32 %v725, %v641
  %v786 = vmul.f32 %v725, %v646
  %v787 = vmul.f32 %v725, %v649
  %v788 = vmul.f32 %v725, %v654
  %v789 = vmul.f32 %v725, %v657
  %v790 = vsel %vm661, %v406, %v726
  %v791 = vsel %vm662, %v409, %v727
  %v792 = vsel %vm663, %v414, %v728
  %v793 = vsel %vm664, %v417, %v729
  %v794 = vsel %vm665, %v422, %v730
  %v795 = vsel %vm666, %v425, %v731
  %v796 = vsel %vm667, %v430, %v732
  %v797 = vsel %vm668, %v433, %v733
  %v798 = vsel %vm669, %v438, %v734
  %v799 = vsel %vm670, %v441, %v735
  %v800 = vsel %vm671, %v446, %v736
  %v801 = vsel %vm672, %v449, %v737
  %v802 = vsel %vm673, %v454, %v738
  %v803 = vsel %vm674, %v457, %v739
  %v804 = vsel %vm675, %v462, %v740
  %v805 = vsel %vm676, %v465, %v741
  %v806 = vsel %vm677, %v470, %v742
  %v807 = vsel %vm678, %v473, %v743
  %v808 = vsel %vm679, %v478, %v744
  %v809 = vsel %vm680, %v481, %v745
  %v810 = vsel %vm681, %v486, %v746
  %v811 = vsel %vm682, %v489, %v747
  %v812 = vsel %vm683, %v494, %v748
  %v813 = vsel %vm684, %v497, %v749
  %v814 = vsel %vm685, %v502, %v750
  %v815 = vsel %vm686, %v505, %v751
  %v816 = vsel %vm687, %v510, %v752
  %v817 = vsel %vm688, %v513, %v753
  %v818 = vsel %vm689, %v518, %v754
  %v819 = vsel %vm690, %v521, %v755
  %v820 = vsel %vm691, %v526, %v756
  %v821 = vsel %vm692, %v529, %v757
  %v822 = vsel %vm693, %v534, %v758
  %v823 = vsel %vm694, %v537, %v759
  %v824 = vsel %vm695, %v542, %v760
  %v825 = vsel %vm696, %v545, %v761
  %v826 = vsel %vm697, %v550, %v762
  %v827 = vsel %vm698, %v553, %v763
  %v828 = vsel %vm699, %v558, %v764
  %v829 = vsel %vm700, %v561, %v765
  %v830 = vsel %vm701, %v566, %v766
  %v831 = vsel %vm702, %v569, %v767
  %v832 = vsel %vm703, %v574, %v768
  %v833 = vsel %vm704, %v577, %v769
  %v834 = vsel %vm705, %v582, %v770
  %v835 = vsel %vm706, %v585, %v771
  %v836 = vsel %vm707, %v590, %v772
  %v837 = vsel %vm708, %v593, %v773
  %v838 = vsel %vm709, %v598, %v774
  %v839 = vsel %vm710, %v601, %v775
  %v840 = vsel %vm711, %v606, %v776
  %v841 = vsel %vm712, %v609, %v777
  %v842 = vsel %vm713, %v614, %v778
  %v843 = vsel %vm714, %v617, %v779
  %v844 = vsel %vm715, %v622, %v780
  %v845 = vsel %vm716, %v625, %v781
  %v846 = vsel %vm717, %v630, %v782
  %v847 = vsel %vm718, %v633, %v783
  %v848 = vsel %vm719, %v638, %v784
  %v849 = vsel %vm720, %v641, %v785
  %v850 = vsel %vm721, %v646, %v786
  %v851 = vsel %vm722, %v649, %v787
  %v852 = vsel %vm723, %v654, %v788
  %v853 = vsel %vm724, %v657, %v789
  %v854 = vpack.c.bf16 %v791, %v790
  %v855 = vpack.c.bf16 %v793, %v792
  %v856 = vpack.c.bf16 %v795, %v794
  %v857 = vpack.c.bf16 %v797, %v796
  %v858 = vpack.c.bf16 %v799, %v798
  %v859 = vpack.c.bf16 %v801, %v800
  %v860 = vpack.c.bf16 %v803, %v802
  %v861 = vpack.c.bf16 %v805, %v804
  %v862 = vpack.c.bf16 %v807, %v806
  %v863 = vpack.c.bf16 %v809, %v808
  %v864 = vpack.c.bf16 %v811, %v810
  %v865 = vpack.c.bf16 %v813, %v812
  %v866 = vpack.c.bf16 %v815, %v814
  %v867 = vpack.c.bf16 %v817, %v816
  %v868 = vpack.c.bf16 %v819, %v818
  %v869 = vpack.c.bf16 %v821, %v820
  %v870 = vpack.c.bf16 %v823, %v822
  %v871 = vpack.c.bf16 %v825, %v824
  %v872 = vpack.c.bf16 %v827, %v826
  %v873 = vpack.c.bf16 %v829, %v828
  %v874 = vpack.c.bf16 %v831, %v830
  %v875 = vpack.c.bf16 %v833, %v832
  %v876 = vpack.c.bf16 %v835, %v834
  %v877 = vpack.c.bf16 %v837, %v836
  %v878 = vpack.c.bf16 %v839, %v838
  %v879 = vpack.c.bf16 %v841, %v840
  %v880 = vpack.c.bf16 %v843, %v842
  %v881 = vpack.c.bf16 %v845, %v844
  %v882 = vpack.c.bf16 %v847, %v846
  %v883 = vpack.c.bf16 %v849, %v848
  %v884 = vpack.c.bf16 %v851, %v850
  %v885 = vpack.c.bf16 %v853, %v852
  %v918 = vunpack.c.l.b16 %v854
  %v919 = vunpack.c.h.b16 %v854
  %v920 = vunpack.c.l.b16 %v855
  %v921 = vunpack.c.h.b16 %v855
  %v922 = vunpack.c.l.b16 %v856
  %v923 = vunpack.c.h.b16 %v856
  %v924 = vunpack.c.l.b16 %v857
  %v925 = vunpack.c.h.b16 %v857
  %v926 = vunpack.c.l.b16 %v858
  %v927 = vunpack.c.h.b16 %v858
  %v928 = vunpack.c.l.b16 %v859
  %v929 = vunpack.c.h.b16 %v859
  %v930 = vunpack.c.l.b16 %v860
  %v931 = vunpack.c.h.b16 %v860
  %v932 = vunpack.c.l.b16 %v861
  %v933 = vunpack.c.h.b16 %v861
  %v934 = vunpack.c.l.b16 %v862
  %v935 = vunpack.c.h.b16 %v862
  %v936 = vunpack.c.l.b16 %v863
  %v937 = vunpack.c.h.b16 %v863
  %v938 = vunpack.c.l.b16 %v864
  %v939 = vunpack.c.h.b16 %v864
  %v940 = vunpack.c.l.b16 %v865
  %v941 = vunpack.c.h.b16 %v865
  %v942 = vunpack.c.l.b16 %v866
  %v943 = vunpack.c.h.b16 %v866
  %v944 = vunpack.c.l.b16 %v867
  %v945 = vunpack.c.h.b16 %v867
  %v946 = vunpack.c.l.b16 %v868
  %v947 = vunpack.c.h.b16 %v868
  %v948 = vunpack.c.l.b16 %v869
  %v949 = vunpack.c.h.b16 %v869
  %v950 = vunpack.c.l.b16 %v870
  %v951 = vunpack.c.h.b16 %v870
  %v952 = vunpack.c.l.b16 %v871
  %v953 = vunpack.c.h.b16 %v871
  %v954 = vunpack.c.l.b16 %v872
  %v955 = vunpack.c.h.b16 %v872
  %v956 = vunpack.c.l.b16 %v873
  %v957 = vunpack.c.h.b16 %v873
  %v958 = vunpack.c.l.b16 %v874
  %v959 = vunpack.c.h.b16 %v874
  %v960 = vunpack.c.l.b16 %v875
  %v961 = vunpack.c.h.b16 %v875
  %v962 = vunpack.c.l.b16 %v876
  %v963 = vunpack.c.h.b16 %v876
  %v964 = vunpack.c.l.b16 %v877
  %v965 = vunpack.c.h.b16 %v877
  %v966 = vunpack.c.l.b16 %v878
  %v967 = vunpack.c.h.b16 %v878
  %v968 = vunpack.c.l.b16 %v879
  %v969 = vunpack.c.h.b16 %v879
  %v970 = vunpack.c.l.b16 %v880
  %v971 = vunpack.c.h.b16 %v880
  %v972 = vunpack.c.l.b16 %v881
  %v973 = vunpack.c.h.b16 %v881
  %v974 = vunpack.c.l.b16 %v882
  %v975 = vunpack.c.h.b16 %v882
  %v976 = vunpack.c.l.b16 %v883
  %v977 = vunpack.c.h.b16 %v883
  %v978 = vunpack.c.l.b16 %v884
  %v979 = vunpack.c.h.b16 %v884
  %v980 = vunpack.c.l.b16 %v885
  %v981 = vunpack.c.h.b16 %v885
  %v982 = vpack.c.b16 %v918, %v918
  %v983 = vpack.c.b16 %v919, %v919
  %v984 = vpack.c.b16 %v920, %v920
  %v985 = vpack.c.b16 %v921, %v921
  %v986 = vpack.c.b16 %v922, %v922
  %v987 = vpack.c.b16 %v923, %v923
  %v988 = vpack.c.b16 %v924, %v924
  %v989 = vpack.c.b16 %v925, %v925
  %v990 = vpack.c.b16 %v926, %v926
  %v991 = vpack.c.b16 %v927, %v927
  %v992 = vpack.c.b16 %v928, %v928
  %v993 = vpack.c.b16 %v929, %v929
  %v994 = vpack.c.b16 %v930, %v930
  %v995 = vpack.c.b16 %v931, %v931
  %v996 = vpack.c.b16 %v932, %v932
  %v997 = vpack.c.b16 %v933, %v933
  %v998 = vpack.c.b16 %v934, %v934
  %v999 = vpack.c.b16 %v935, %v935
  %v1000 = vpack.c.b16 %v936, %v936
  %v1001 = vpack.c.b16 %v937, %v937
  %v1002 = vpack.c.b16 %v938, %v938
  %v1003 = vpack.c.b16 %v939, %v939
  %v1004 = vpack.c.b16 %v940, %v940
  %v1005 = vpack.c.b16 %v941, %v941
  %v1006 = vpack.c.b16 %v942, %v942
  %v1007 = vpack.c.b16 %v943, %v943
  %v1008 = vpack.c.b16 %v944, %v944
  %v1009 = vpack.c.b16 %v945, %v945
  %v1010 = vpack.c.b16 %v946, %v946
  %v1011 = vpack.c.b16 %v947, %v947
  %v1012 = vpack.c.b16 %v948, %v948
  %v1013 = vpack.c.b16 %v949, %v949
  %v1014 = vpack.c.b16 %v950, %v950
  %v1015 = vpack.c.b16 %v951, %v951
  %v1016 = vpack.c.b16 %v952, %v952
  %v1017 = vpack.c.b16 %v953, %v953
  %v1018 = vpack.c.b16 %v954, %v954
  %v1019 = vpack.c.b16 %v955, %v955
  %v1020 = vpack.c.b16 %v956, %v956
  %v1021 = vpack.c.b16 %v957, %v957
  %v1022 = vpack.c.b16 %v958, %v958
  %v1023 = vpack.c.b16 %v959, %v959
  %v1024 = vpack.c.b16 %v960, %v960
  %v1025 = vpack.c.b16 %v961, %v961
  %v1026 = vpack.c.b16 %v962, %v962
  %v1027 = vpack.c.b16 %v963, %v963
  %v1028 = vpack.c.b16 %v964, %v964
  %v1029 = vpack.c.b16 %v965, %v965
  %v1030 = vpack.c.b16 %v966, %v966
  %v1031 = vpack.c.b16 %v967, %v967
  %v1032 = vpack.c.b16 %v968, %v968
  %v1033 = vpack.c.b16 %v969, %v969
  %v1034 = vpack.c.b16 %v970, %v970
  %v1035 = vpack.c.b16 %v971, %v971
  %v1036 = vpack.c.b16 %v972, %v972
  %v1037 = vpack.c.b16 %v973, %v973
  %v1038 = vpack.c.b16 %v974, %v974
  %v1039 = vpack.c.b16 %v975, %v975
  %v1040 = vpack.c.b16 %v976, %v976
  %v1041 = vpack.c.b16 %v977, %v977
  %v1042 = vpack.c.b16 %v978, %v978
  %v1043 = vpack.c.b16 %v979, %v979
  %v1044 = vpack.c.b16 %v980, %v980
  %v1045 = vpack.c.b16 %v981, %v981
  %vm1110 = vcmask 257024
  %1111 = vst.msk [vmem:[%s4] sm:$0xf] %vm1110, %v982
  %1112 = vst.msk [vmem:[%s4 + $0x4] sm:$0xf] %vm1110, %v983
  %1113 = vst.msk [vmem:[%s4 + $0x8] sm:$0xf] %vm1110, %v984
  %1114 = vst.msk [vmem:[%s4 + $0xc] sm:$0xf] %vm1110, %v985
  %1115 = vst.msk [vmem:[%s4 + $0x10] sm:$0xf] %vm1110, %v986
  %1116 = vst.msk [vmem:[%s4 + $0x14] sm:$0xf] %vm1110, %v987
  %1117 = vst.msk [vmem:[%s4 + $0x18] sm:$0xf] %vm1110, %v988
  %1118 = vst.msk [vmem:[%s4 + $0x1c] sm:$0xf] %vm1110, %v989
  %1119 = vst.msk [vmem:[%s4 + $0x20] sm:$0xf] %vm1110, %v990
  %1120 = vst.msk [vmem:[%s4 + $0x24] sm:$0xf] %vm1110, %v991
  %1121 = vst.msk [vmem:[%s4 + $0x28] sm:$0xf] %vm1110, %v992
  %1122 = vst.msk [vmem:[%s4 + $0x2c] sm:$0xf] %vm1110, %v993
  %1123 = vst.msk [vmem:[%s4 + $0x30] sm:$0xf] %vm1110, %v994
  %1124 = vst.msk [vmem:[%s4 + $0x34] sm:$0xf] %vm1110, %v995
  %1125 = vst.msk [vmem:[%s4 + $0x38] sm:$0xf] %vm1110, %v996
  %1126 = vst.msk [vmem:[%s4 + $0x3c] sm:$0xf] %vm1110, %v997
  %1127 = vst.msk [vmem:[%s4 + $0x40] sm:$0xf] %vm1110, %v998
  %1128 = vst.msk [vmem:[%s4 + $0x44] sm:$0xf] %vm1110, %v999
  %1129 = vst.msk [vmem:[%s4 + $0x48] sm:$0xf] %vm1110, %v1000
  %1130 = vst.msk [vmem:[%s4 + $0x4c] sm:$0xf] %vm1110, %v1001
  %1131 = vst.msk [vmem:[%s4 + $0x50] sm:$0xf] %vm1110, %v1002
  %1132 = vst.msk [vmem:[%s4 + $0x54] sm:$0xf] %vm1110, %v1003
  %1133 = vst.msk [vmem:[%s4 + $0x58] sm:$0xf] %vm1110, %v1004
  %1134 = vst.msk [vmem:[%s4 + $0x5c] sm:$0xf] %vm1110, %v1005
  %1135 = vst.msk [vmem:[%s4 + $0x60] sm:$0xf] %vm1110, %v1006
  %1136 = vst.msk [vmem:[%s4 + $0x64] sm:$0xf] %vm1110, %v1007
  %1137 = vst.msk [vmem:[%s4 + $0x68] sm:$0xf] %vm1110, %v1008
  %1138 = vst.msk [vmem:[%s4 + $0x6c] sm:$0xf] %vm1110, %v1009
  %1139 = vst.msk [vmem:[%s4 + $0x70] sm:$0xf] %vm1110, %v1010
  %1140 = vst.msk [vmem:[%s4 + $0x74] sm:$0xf] %vm1110, %v1011
  %1141 = vst.msk [vmem:[%s4 + $0x78] sm:$0xf] %vm1110, %v1012
  %1142 = vst.msk [vmem:[%s4 + $0x7c] sm:$0xf] %vm1110, %v1013
  %1143 = vst.msk [vmem:[%s4 + $0x80] sm:$0xf] %vm1110, %v1014
  %1144 = vst.msk [vmem:[%s4 + $0x84] sm:$0xf] %vm1110, %v1015
  %1145 = vst.msk [vmem:[%s4 + $0x88] sm:$0xf] %vm1110, %v1016
  %1146 = vst.msk [vmem:[%s4 + $0x8c] sm:$0xf] %vm1110, %v1017
  %1147 = vst.msk [vmem:[%s4 + $0x90] sm:$0xf] %vm1110, %v1018
  %1148 = vst.msk [vmem:[%s4 + $0x94] sm:$0xf] %vm1110, %v1019
  %1149 = vst.msk [vmem:[%s4 + $0x98] sm:$0xf] %vm1110, %v1020
  %1150 = vst.msk [vmem:[%s4 + $0x9c] sm:$0xf] %vm1110, %v1021
  %1151 = vst.msk [vmem:[%s4 + $0xa0] sm:$0xf] %vm1110, %v1022
  %1152 = vst.msk [vmem:[%s4 + $0xa4] sm:$0xf] %vm1110, %v1023
  %1153 = vst.msk [vmem:[%s4 + $0xa8] sm:$0xf] %vm1110, %v1024
  %1154 = vst.msk [vmem:[%s4 + $0xac] sm:$0xf] %vm1110, %v1025
  %1155 = vst.msk [vmem:[%s4 + $0xb0] sm:$0xf] %vm1110, %v1026
  %1156 = vst.msk [vmem:[%s4 + $0xb4] sm:$0xf] %vm1110, %v1027
  %1157 = vst.msk [vmem:[%s4 + $0xb8] sm:$0xf] %vm1110, %v1028
  %1158 = vst.msk [vmem:[%s4 + $0xbc] sm:$0xf] %vm1110, %v1029
  %1159 = vst.msk [vmem:[%s4 + $0xc0] sm:$0xf] %vm1110, %v1030
  %1160 = vst.msk [vmem:[%s4 + $0xc4] sm:$0xf] %vm1110, %v1031
  %1161 = vst.msk [vmem:[%s4 + $0xc8] sm:$0xf] %vm1110, %v1032
  %1162 = vst.msk [vmem:[%s4 + $0xcc] sm:$0xf] %vm1110, %v1033
  %1163 = vst.msk [vmem:[%s4 + $0xd0] sm:$0xf] %vm1110, %v1034
  %1164 = vst.msk [vmem:[%s4 + $0xd4] sm:$0xf] %vm1110, %v1035
  %1165 = vst.msk [vmem:[%s4 + $0xd8] sm:$0xf] %vm1110, %v1036
  %1166 = vst.msk [vmem:[%s4 + $0xdc] sm:$0xf] %vm1110, %v1037
  %1167 = vst.msk [vmem:[%s4 + $0xe0] sm:$0xf] %vm1110, %v1038
  %1168 = vst.msk [vmem:[%s4 + $0xe4] sm:$0xf] %vm1110, %v1039
  %1169 = vst.msk [vmem:[%s4 + $0xe8] sm:$0xf] %vm1110, %v1040
  %1170 = vst.msk [vmem:[%s4 + $0xec] sm:$0xf] %vm1110, %v1041
  %1171 = vst.msk [vmem:[%s4 + $0xf0] sm:$0xf] %vm1110, %v1042
  %1172 = vst.msk [vmem:[%s4 + $0xf4] sm:$0xf] %vm1110, %v1043
  %1173 = vst.msk [vmem:[%s4 + $0xf8] sm:$0xf] %vm1110, %v1044
  %1174 = vst.msk [vmem:[%s4 + $0xfc] sm:$0xf] %vm1110, %v1045
  // Predicated region
  $region18: #{deconv_block.1} parent=0 // pred_check
    _
  $region19: #{deconv_block.1} parent=0 // pred_check_branch
    %1176 = sbr.rel (0) target = $region21
  $region20: #{deconv_block.1} parent=0 // pred_region
    _
  $region21: #{deconv_block.1} parent=0 // pred_fallthru
    _
  // Predicated region
  $region22: #{deconv_block.1} parent=0 // pred_check
    _
  $region23: #{deconv_block.1} parent=0 // pred_check_branch
    %1178 = sbr.rel (0) target = $region25
  $region24: #{deconv_block.1} parent=0 // pred_region
    _
  $region25: #{deconv_block.1} parent=0 // pred_fallthru
    _

</llo_original>
